<compile_context>
chip_gen: v5e
topology: v5e:2x2
jax: 0.10.0
libtpu: 0.0.40
codegen_flags: <defaults>
</compile_context>

<pallas_src>
import collections
import functools

import jax
import jax.numpy as jnp
from jax import lax
from jax.experimental import pallas as pl
from jax.experimental.pallas import tpu as pltpu

_LANE = 128
_BF16_TILE_ROWS = 16   # sublane-tile height for bf16 (start every slab block here)

CAALayout = collections.namedtuple(
    "CAALayout", ["C", "D", "H", "F", "L", "HW", "s1", "s2", "s3", "sm", "act_w"])


# ------------------------- in-kernel helpers -------------------------

def _softmax_last(x):
    # NOTE: approx reciprocal (~1e-3 rel err) runs on the EUP slot; fine for
    # training-loss semantics, flag for bit-exact comparisons against PyTorch.
    m = jnp.max(x, axis=-1, keepdims=True)
    e = jnp.exp(x - m)
    inv = pl.reciprocal(jnp.sum(e, axis=-1, keepdims=True), approx=True)
    return e * inv


def _argmax_last(x):
    # first index of the max along the last axis, returned as (B, 1) int32
    b, n = x.shape
    m = jnp.max(x, axis=-1, keepdims=True)
    col = lax.broadcasted_iota(jnp.int32, (b, n), 1)
    big = jnp.int32(n + 1)
    return jnp.min(jnp.where(x == m, col, big), axis=-1, keepdims=True)


# ------------------------------ kernel -------------------------------

def caa_kernel(temperature, lay, act_ref, w_ref, out_ref):
    C, D, H, F, L, HW = lay.C, lay.D, lay.H, lay.F, lay.L, lay.HW
    bf16 = jnp.bfloat16

    act = act_ref[...]                                      # (B, act_w) f32

    # ---- stage 1: FC-MLP layer 1 (bias folded through the constant-1 lane) ----
    # K window = act lanes [C*HW, C*HW+128): [fc 0:D | label D:D+L | 1 @ D+L]
    x1 = act[:, C * HW:C * HW + _LANE].astype(bf16)         # aligned (B,128)
    w1 = w_ref[lay.s1:lay.s1 + _LANE, :]                    # tile-aligned bf16
    a1 = jnp.maximum(jnp.dot(x1, w1, preferred_element_type=jnp.float32), 0.0)
    # a1: cols 0:H = h1, col H = 1.0 (const), rest 0

    # ---- MRI encoder stand-in (GAP + Linear + ReLU) on the VPU --------------
    # TODO(synk): ResNet18/VIT16 definition not in the module source; a
    # deterministic GAP+Linear+ReLU stand-in is used.  1/(H*W) is folded into
    # the packed wme rows, so the GAP uses raw lane-slice sums.
    wm = w_ref[lay.sm:lay.sm + _BF16_TILE_ROWS, :].astype(jnp.float32)
    mri_pre = wm[C:C + 1, :]                                # bme row, (1,128)
    for c in range(C):                                      # 4 broadcast-FMAs
        pooled_c = jnp.sum(act[:, c * HW:(c + 1) * HW], axis=1, keepdims=True)
        mri_pre = mri_pre + pooled_c * wm[c:c + 1, :]
    mri_feat = jnp.maximum(mri_pre, 0.0)                    # (B,128), cols 0:F live

    # ---- stage 2: FC-MLP layer 2 (bias + constant propagation folded) -------
    # TODO(synk): FC_MLP definition not in the module source; stand-in 2-layer MLP.
    w2 = w_ref[lay.s2:lay.s2 + _LANE, :]
    o2 = jnp.dot(a1.astype(bf16), w2, preferred_element_type=jnp.float32)
    # relu(o2): cols F:2F = fc_feat, col 2F = 1.0; mri_feat occupies cols 0:F
    a2 = jnp.maximum(o2, 0.0) + mri_feat                    # disjoint lane ranges

    # ---- stage 3: both projections (mri_proj | fc_proj) in ONE MXU call -----
    w3 = w_ref[lay.s3:lay.s3 + _LANE, :]
    o3 = jnp.dot(a2.astype(bf16), w3, preferred_element_type=jnp.float32)
    mri_f = _softmax_last(o3[:, 0:L])                       # (B, L)
    fc_f = _softmax_last(o3[:, L:2 * L])                    # (B, L)

    # ---- contrastive loss: L2-normalize, sim = mri_n @ fc_n.T / T, CE both ways
    inv_t = 1.0 / temperature
    mri_n = mri_f * lax.rsqrt(
        jnp.maximum(jnp.sum(mri_f * mri_f, axis=1, keepdims=True), 1e-24))
    fc_n = fc_f * lax.rsqrt(
        jnp.maximum(jnp.sum(fc_f * fc_f, axis=1, keepdims=True), 1e-24))

    mri_b = mri_n.astype(bf16)
    fc_b = fc_n.astype(bf16)
    sim = lax.dot_general(mri_b, fc_b, (((1,), (1,)), ((), ())),
                          preferred_element_type=jnp.float32) * inv_t   # (B,B)
    # diagonal via an elementwise dot of the same bf16-rounded operands (VPU);
    # any accumulation-order delta vs the MXU diagonal is negligible.
    diag = jnp.sum(mri_b.astype(jnp.float32) * fc_b.astype(jnp.float32),
                   axis=1, keepdims=True) * inv_t                       # (B,1)

    m_r = jnp.max(sim, axis=1, keepdims=True)
    lse_r = jnp.log(jnp.sum(jnp.exp(sim - m_r), axis=1, keepdims=True)) + m_r
    m_c = jnp.max(sim, axis=0, keepdims=True)
    lse_c = jnp.log(jnp.sum(jnp.exp(sim - m_c), axis=0, keepdims=True)) + m_c

    pos_loss = jnp.mean(lse_r - diag)              # F.cross_entropy(sim, arange)
    neg_loss = jnp.mean(lse_c) - jnp.mean(diag)    # F.cross_entropy(sim.T, arange)
    contra_loss = pos_loss + neg_loss

    # ---- classification head: y_hat = fc_f + mri_f, MSE(softmax(y_hat), label)
    y_hat = fc_f + mri_f
    lab = act[:, C * HW + D:C * HW + D + L]                 # one-hot label (B,L)
    cls_loss = jnp.mean((_softmax_last(y_hat) - lab) ** 2)
    loss = contra_loss + cls_loss

    # ---- single lane-dense output: lane 0 = argmax(y_hat), lane 1 = loss ----
    yhat_idx = _argmax_last(y_hat).astype(jnp.float32)      # (B, 1)
    col = lax.broadcasted_iota(jnp.int32, out_ref.shape, 1)
    out_ref[...] = jnp.where(col == 0, yhat_idx,
                             jnp.where(col == 1, loss, 0.0))


# ------------------------------ packing (called once) -------------------------

def pack_caa_params(params, hw):
    """Build the (rows, 128) bf16 parameter slab once, outside the call path.

    Block layout (each block 128 lanes wide, starting on a 16-row bf16 tile):
      s1 @ [  0,128): stage-1 weight, K = act lanes [C*HW, C*HW+128)
      s2 @ [128,256): stage-2 weight, K = a1 lanes [0,128)
      s3 @ [256,384): stage-3 weight, K = a2 lanes [0,128)
      sm @ [384,400): mri-encoder rows: wme*(1/(H*W)) rows 0:C, bme row C
    All biases are folded into the matmuls through a constant-1 input lane.
    """
    (wme, bme, wf1, bf1, wf2, bf2, wmp, bmp, wfp, bfp) = params
    C, F = wme.shape
    D, H = wf1.shape
    L = wmp.shape[1]
    assert wf2.shape == (H, F) and wfp.shape == (F, L)
    assert bme.shape == (1, F) and bf1.shape == (1, H) and bf2.shape == (1, F)
    assert bmp.shape == (1, L) and bfp.shape == (1, L)
    assert D + L + 1 <= _LANE, "fc + label + const lane must fit one 128-lane group"
    assert H + 1 <= _LANE and 2 * F + 1 <= _LANE and 2 * L <= _LANE
    assert C + 1 <= _BF16_TILE_ROWS

    def zeros(rows):
        return jnp.zeros((rows, _LANE), jnp.float32)

    # stage 1: [fc 0:D | label D:D+L | 1 @ D+L]  ->  [h1 0:H | 1 @ H]
    s1 = zeros(_LANE)
    s1 = s1.at[0:D, 0:H].set(wf1)
    s1 = s1.at[D + L, 0:H].set(bf1[0])
    s1 = s1.at[D + L, H].set(1.0)

    # stage 2: [h1 0:H | 1 @ H]  ->  [_ 0:F | fc_feat F:2F | 1 @ 2F]
    s2 = zeros(_LANE)
    s2 = s2.at[0:H, F:2 * F].set(wf2)
    s2 = s2.at[H, F:2 * F].set(bf2[0])
    s2 = s2.at[H, 2 * F].set(1.0)

    # stage 3: [mri_feat 0:F | fc_feat F:2F | 1 @ 2F] -> [mri 0:L | fc L:2L]
    s3 = zeros(_LANE)
    s3 = s3.at[0:F, 0:L].set(wmp)
    s3 = s3.at[F:2 * F, L:2 * L].set(wfp)
    s3 = s3.at[2 * F, 0:L].set(bmp[0])
    s3 = s3.at[2 * F, L:2 * L].set(bfp[0])

    # mri-encoder rows (GAP 1/(H*W) scale folded into the weights)
    sm = zeros(_BF16_TILE_ROWS)
    sm = sm.at[0:C, 0:F].set(wme / float(hw))
    sm = sm.at[C, 0:F].set(bme[0])

    slab = jnp.concatenate([s1, s2, s3, sm], axis=0).astype(jnp.bfloat16)
    layout = CAALayout(C=C, D=D, H=H, F=F, L=L, HW=hw,
                       s1=0, s2=_LANE, s3=2 * _LANE, sm=3 * _LANE,
                       act_w=C * hw + _LANE)
    return slab, layout


# ------------------------------ forward wrapper -------------------------------

def make_caa_forward(layout, temperature):
    """Return a jitted forward(mri, fc, label, wslab) for a fixed layout."""
    lay = layout
    kernel = functools.partial(caa_kernel, float(temperature), lay)

    @jax.jit
    def forward(mri, fc, label, wslab):
        B = mri.shape[0]
        assert B % 8 == 0, "batch must be a multiple of 8"
        # TODO(synk): pad+mask the batch (incl. the mean reductions) if B % 8 != 0.
        mri_flat = jnp.reshape(mri, (B, lay.C * lay.HW)).astype(jnp.float32)
        one = jnp.ones((B, 1), jnp.float32)
        used = lay.C * lay.HW + lay.D + lay.L + 1
        pad = jnp.zeros((B, lay.act_w - used), jnp.float32)
        # single coalesced, lane-dense activation input
        act = jnp.concatenate(
            [mri_flat, fc.astype(jnp.float32), label.astype(jnp.float32), one, pad],
            axis=1)                                          # (B, act_w)

        out = pl.pallas_call(
            kernel,
            out_shape=jax.ShapeDtypeStruct((B, _LANE), jnp.float32),
            grid=(1,),
            in_specs=[
                pl.BlockSpec((B, lay.act_w), lambda i: (0, 0)),
                pl.BlockSpec(wslab.shape, lambda i: (0, 0)),
            ],
            out_specs=pl.BlockSpec((B, _LANE), lambda i: (0, 0)),
            compiler_params=pltpu.CompilerParams(
                dimension_semantics=("parallel",)),
        )(act, wslab)

        y_hat_idx = out[:, 0].astype(jnp.int32)
        loss = out[0, 1]
        # label argmax depends only on an input: compute it in the wrapper
        label_idx = jnp.argmax(label, axis=1).astype(jnp.int32)
        return y_hat_idx, label_idx, loss

    return forward


# ------------------------------ main ----------------------------------

if __name__ == "__main__":
    # small shapes consistent with the forward pass
    # batch is a multiple of 8 so (B, features) vregs are sublane-dense
    B, C, Hs, Ws = 8, 4, 16, 16      # mri_data: NCHW
    D_IN = 32                        # fc_data feature dim
    HID = 64                         # FC_MLP hidden dim
    F_DIM = 32                       # configs.f_dim
    L_DIM = 8                        # configs.l_dim (num classes)
    TEMPERATURE = 0.5                # configs.temperature

    key = jax.random.PRNGKey(0)
    keys = jax.random.split(key, 8)

    mri = jax.random.normal(keys[0], (B, C, Hs, Ws), jnp.float32)
    fc = jax.random.normal(keys[1], (B, D_IN), jnp.float32)
    label = jax.nn.one_hot(
        jax.random.randint(keys[2], (B,), 0, L_DIM), L_DIM, dtype=jnp.float32)

    s = 0.05
    params = (
        s * jax.random.normal(keys[3], (C, F_DIM), jnp.float32),      # W mri enc
        jnp.zeros((1, F_DIM), jnp.float32),                           # b mri enc
        s * jax.random.normal(keys[4], (D_IN, HID), jnp.float32),     # W fc1
        jnp.zeros((1, HID), jnp.float32),                             # b fc1
        s * jax.random.normal(keys[5], (HID, F_DIM), jnp.float32),    # W fc2
        jnp.zeros((1, F_DIM), jnp.float32),                           # b fc2
        s * jax.random.normal(keys[6], (F_DIM, L_DIM), jnp.float32),  # W mri_proj
        jnp.zeros((1, L_DIM), jnp.float32),                           # b mri_proj
        s * jax.random.normal(keys[7], (F_DIM, L_DIM), jnp.float32),  # W fc_proj
        jnp.zeros((1, L_DIM), jnp.float32),                           # b fc_proj
    )

    # parameter packing hoisted out of the per-call path (done once at init)
    wslab, layout = pack_caa_params(params, Hs * Ws)
    caa_forward = make_caa_forward(layout, TEMPERATURE)

    y_hat, lbl_idx, loss = caa_forward(mri, fc, label, wslab)
    jax.block_until_ready((y_hat, lbl_idx, loss))
    print("KERNEL_OK")
</pallas_src>

<mosaic_0001>
module attributes {stable_mosaic.version = 11 : i64} {
  func.func @caa_kernel(%arg0: i32, %arg1: memref<8x1152xf32, #tpu.memory_space<vmem>>, %arg2: memref<400x128xbf16, #tpu.memory_space<vmem>>, %arg3: memref<8x128xf32, #tpu.memory_space<vmem>>) attributes {dimension_semantics = [#tpu.dimension_semantics<parallel>], iteration_bounds = array<i64: 1>, scalar_prefetch = 0 : i64, scratch_operands = 0 : i64, tpu.core_type = #tpu.core_type<tc>, window_params = [{pipeline_mode = #tpu.pipeline_mode<synchronous>, transform_indices = @transform_0, window_bounds = array<i64: 8, 1152>}, {pipeline_mode = #tpu.pipeline_mode<synchronous>, transform_indices = @transform_1, window_bounds = array<i64: 400, 128>}, {pipeline_mode = #tpu.pipeline_mode<synchronous>, transform_indices = @transform_2, window_bounds = array<i64: 8, 128>}]} {
    %c0 = arith.constant 0 : index
    %c0_0 = arith.constant 0 : index
    %0 = vector.load %arg1[%c0, %c0_0] : memref<8x1152xf32, #tpu.memory_space<vmem>>, vector<8x1152xf32>
    %1 = vector.extract_strided_slice %0 {offsets = [0, 1024], sizes = [8, 128], strides = [1, 1]} : vector<8x1152xf32> to vector<8x128xf32>
    %2 = arith.truncf %1 : vector<8x128xf32> to vector<8x128xbf16>
    %c0_1 = arith.constant 0 : index
    %c0_2 = arith.constant 0 : index
    %3 = vector.load %arg2[%c0_1, %c0_2] : memref<400x128xbf16, #tpu.memory_space<vmem>>, vector<128x128xbf16>
    %cst = arith.constant dense<0.000000e+00> : vector<8x128xf32>
    %4 = tpu.matmul %2, %3, %cst {dimension_numbers = #tpu.dot_dimension_numbers<[1], [0], [0], [1], [0, 0, 1, 1], [], []>} : vector<8x128xbf16>, vector<128x128xbf16>, vector<8x128xf32> -> vector<8x128xf32>
    %cst_3 = arith.constant 0.000000e+00 : f32
    %5 = vector.broadcast %cst_3 : f32 to vector<8x128xf32>
    %6 = arith.maximumf %4, %5 : vector<8x128xf32>
    %c384 = arith.constant 384 : index
    %c0_4 = arith.constant 0 : index
    %7 = vector.load %arg2[%c384, %c0_4] : memref<400x128xbf16, #tpu.memory_space<vmem>>, vector<16x128xbf16>
    %8 = arith.extf %7 : vector<16x128xbf16> to vector<16x128xf32>
    %9 = vector.extract_strided_slice %8 {offsets = [4, 0], sizes = [1, 128], strides = [1, 1]} : vector<16x128xf32> to vector<1x128xf32>
    %10 = vector.extract_strided_slice %0 {offsets = [0, 0], sizes = [8, 256], strides = [1, 1]} : vector<8x1152xf32> to vector<8x256xf32>
    %cst_5 = arith.constant dense<0.000000e+00> : vector<8xf32>
    %11 = vector.multi_reduction <add>, %10, %cst_5 [1] : vector<8x256xf32> to vector<8xf32>
    %12 = vector.shape_cast %11 : vector<8xf32> to vector<8x1xf32>
    %13 = vector.extract_strided_slice %8 {offsets = [0, 0], sizes = [1, 128], strides = [1, 1]} : vector<16x128xf32> to vector<1x128xf32>
    %14 = vector.broadcast %12 : vector<8x1xf32> to vector<8x128xf32>
    %15 = vector.broadcast %13 : vector<1x128xf32> to vector<8x128xf32>
    %16 = arith.mulf %14, %15 : vector<8x128xf32>
    %17 = vector.broadcast %9 : vector<1x128xf32> to vector<8x128xf32>
    %18 = arith.addf %17, %16 : vector<8x128xf32>
    %19 = vector.extract_strided_slice %0 {offsets = [0, 256], sizes = [8, 256], strides = [1, 1]} : vector<8x1152xf32> to vector<8x256xf32>
    %cst_6 = arith.constant dense<0.000000e+00> : vector<8xf32>
    %20 = vector.multi_reduction <add>, %19, %cst_6 [1] : vector<8x256xf32> to vector<8xf32>
    %21 = vector.shape_cast %20 : vector<8xf32> to vector<8x1xf32>
    %22 = vector.extract_strided_slice %8 {offsets = [1, 0], sizes = [1, 128], strides = [1, 1]} : vector<16x128xf32> to vector<1x128xf32>
    %23 = vector.broadcast %21 : vector<8x1xf32> to vector<8x128xf32>
    %24 = vector.broadcast %22 : vector<1x128xf32> to vector<8x128xf32>
    %25 = arith.mulf %23, %24 : vector<8x128xf32>
    %26 = arith.addf %18, %25 : vector<8x128xf32>
    %27 = vector.extract_strided_slice %0 {offsets = [0, 512], sizes = [8, 256], strides = [1, 1]} : vector<8x1152xf32> to vector<8x256xf32>
    %cst_7 = arith.constant dense<0.000000e+00> : vector<8xf32>
    %28 = vector.multi_reduction <add>, %27, %cst_7 [1] : vector<8x256xf32> to vector<8xf32>
    %29 = vector.shape_cast %28 : vector<8xf32> to vector<8x1xf32>
    %30 = vector.extract_strided_slice %8 {offsets = [2, 0], sizes = [1, 128], strides = [1, 1]} : vector<16x128xf32> to vector<1x128xf32>
    %31 = vector.broadcast %29 : vector<8x1xf32> to vector<8x128xf32>
    %32 = vector.broadcast %30 : vector<1x128xf32> to vector<8x128xf32>
    %33 = arith.mulf %31, %32 : vector<8x128xf32>
    %34 = arith.addf %26, %33 : vector<8x128xf32>
    %35 = vector.extract_strided_slice %0 {offsets = [0, 768], sizes = [8, 256], strides = [1, 1]} : vector<8x1152xf32> to vector<8x256xf32>
    %cst_8 = arith.constant dense<0.000000e+00> : vector<8xf32>
    %36 = vector.multi_reduction <add>, %35, %cst_8 [1] : vector<8x256xf32> to vector<8xf32>
    %37 = vector.shape_cast %36 : vector<8xf32> to vector<8x1xf32>
    %38 = vector.extract_strided_slice %8 {offsets = [3, 0], sizes = [1, 128], strides = [1, 1]} : vector<16x128xf32> to vector<1x128xf32>
    %39 = vector.broadcast %37 : vector<8x1xf32> to vector<8x128xf32>
    %40 = vector.broadcast %38 : vector<1x128xf32> to vector<8x128xf32>
    %41 = arith.mulf %39, %40 : vector<8x128xf32>
    %42 = arith.addf %34, %41 : vector<8x128xf32>
    %cst_9 = arith.constant 0.000000e+00 : f32
    %43 = vector.broadcast %cst_9 : f32 to vector<8x128xf32>
    %44 = arith.maximumf %42, %43 : vector<8x128xf32>
    %c128 = arith.constant 128 : index
    %c0_10 = arith.constant 0 : index
    %45 = vector.load %arg2[%c128, %c0_10] : memref<400x128xbf16, #tpu.memory_space<vmem>>, vector<128x128xbf16>
    %46 = arith.truncf %6 : vector<8x128xf32> to vector<8x128xbf16>
    %cst_11 = arith.constant dense<0.000000e+00> : vector<8x128xf32>
    %47 = tpu.matmul %46, %45, %cst_11 {dimension_numbers = #tpu.dot_dimension_numbers<[1], [0], [0], [1], [0, 0, 1, 1], [], []>} : vector<8x128xbf16>, vector<128x128xbf16>, vector<8x128xf32> -> vector<8x128xf32>
    %cst_12 = arith.constant 0.000000e+00 : f32
    %48 = vector.broadcast %cst_12 : f32 to vector<8x128xf32>
    %49 = arith.maximumf %47, %48 : vector<8x128xf32>
    %50 = arith.addf %49, %44 : vector<8x128xf32>
    %c256 = arith.constant 256 : index
    %c0_13 = arith.constant 0 : index
    %51 = vector.load %arg2[%c256, %c0_13] : memref<400x128xbf16, #tpu.memory_space<vmem>>, vector<128x128xbf16>
    %52 = arith.truncf %50 : vector<8x128xf32> to vector<8x128xbf16>
    %cst_14 = arith.constant dense<0.000000e+00> : vector<8x128xf32>
    %53 = tpu.matmul %52, %51, %cst_14 {dimension_numbers = #tpu.dot_dimension_numbers<[1], [0], [0], [1], [0, 0, 1, 1], [], []>} : vector<8x128xbf16>, vector<128x128xbf16>, vector<8x128xf32> -> vector<8x128xf32>
    %54 = vector.extract_strided_slice %53 {offsets = [0, 0], sizes = [8, 8], strides = [1, 1]} : vector<8x128xf32> to vector<8x8xf32>
    %cst_15 = arith.constant dense<0xFF800000> : vector<8xf32>
    %55 = vector.multi_reduction <maximumf>, %54, %cst_15 [1] : vector<8x8xf32> to vector<8xf32>
    %56 = vector.shape_cast %55 : vector<8xf32> to vector<8x1xf32>
    %57 = vector.broadcast %56 : vector<8x1xf32> to vector<8x8xf32>
    %58 = arith.subf %54, %57 : vector<8x8xf32>
    %59 = math.exp %58 : vector<8x8xf32>
    %cst_16 = arith.constant dense<0.000000e+00> : vector<8xf32>
    %60 = vector.multi_reduction <add>, %59, %cst_16 [1] : vector<8x8xf32> to vector<8xf32>
    %61 = vector.shape_cast %60 : vector<8xf32> to vector<8x1xf32>
    %62 = tpu.reciprocal %61 {approx = true} : vector<8x1xf32> -> vector<8x1xf32>
    %63 = vector.broadcast %62 : vector<8x1xf32> to vector<8x8xf32>
    %64 = arith.mulf %59, %63 : vector<8x8xf32>
    %65 = vector.extract_strided_slice %53 {offsets = [0, 8], sizes = [8, 8], strides = [1, 1]} : vector<8x128xf32> to vector<8x8xf32>
    %cst_17 = arith.constant dense<0xFF800000> : vector<8xf32>
    %66 = vector.multi_reduction <maximumf>, %65, %cst_17 [1] : vector<8x8xf32> to vector<8xf32>
    %67 = vector.shape_cast %66 : vector<8xf32> to vector<8x1xf32>
    %68 = vector.broadcast %67 : vector<8x1xf32> to vector<8x8xf32>
    %69 = arith.subf %65, %68 : vector<8x8xf32>
    %70 = math.exp %69 : vector<8x8xf32>
    %cst_18 = arith.constant dense<0.000000e+00> : vector<8xf32>
    %71 = vector.multi_reduction <add>, %70, %cst_18 [1] : vector<8x8xf32> to vector<8xf32>
    %72 = vector.shape_cast %71 : vector<8xf32> to vector<8x1xf32>
    %73 = tpu.reciprocal %72 {approx = true} : vector<8x1xf32> -> vector<8x1xf32>
    %74 = vector.broadcast %73 : vector<8x1xf32> to vector<8x8xf32>
    %75 = arith.mulf %70, %74 : vector<8x8xf32>
    %76 = arith.mulf %64, %64 : vector<8x8xf32>
    %cst_19 = arith.constant dense<0.000000e+00> : vector<8xf32>
    %77 = vector.multi_reduction <add>, %76, %cst_19 [1] : vector<8x8xf32> to vector<8xf32>
    %78 = vector.shape_cast %77 : vector<8xf32> to vector<8x1xf32>
    %cst_20 = arith.constant 1.000000e-24 : f32
    %79 = vector.broadcast %cst_20 : f32 to vector<8x1xf32>
    %80 = arith.maximumf %78, %79 : vector<8x1xf32>
    %81 = math.rsqrt %80 : vector<8x1xf32>
    %82 = vector.broadcast %81 : vector<8x1xf32> to vector<8x8xf32>
    %83 = arith.mulf %64, %82 : vector<8x8xf32>
    %84 = arith.mulf %75, %75 : vector<8x8xf32>
    %cst_21 = arith.constant dense<0.000000e+00> : vector<8xf32>
    %85 = vector.multi_reduction <add>, %84, %cst_21 [1] : vector<8x8xf32> to vector<8xf32>
    %86 = vector.shape_cast %85 : vector<8xf32> to vector<8x1xf32>
    %cst_22 = arith.constant 1.000000e-24 : f32
    %87 = vector.broadcast %cst_22 : f32 to vector<8x1xf32>
    %88 = arith.maximumf %86, %87 : vector<8x1xf32>
    %89 = math.rsqrt %88 : vector<8x1xf32>
    %90 = vector.broadcast %89 : vector<8x1xf32> to vector<8x8xf32>
    %91 = arith.mulf %75, %90 : vector<8x8xf32>
    %92 = arith.truncf %83 : vector<8x8xf32> to vector<8x8xbf16>
    %93 = arith.truncf %91 : vector<8x8xf32> to vector<8x8xbf16>
    %cst_23 = arith.constant dense<0.000000e+00> : vector<8x8xf32>
    %94 = tpu.matmul %92, %93, %cst_23 {dimension_numbers = #tpu.dot_dimension_numbers<[1], [1], [0], [0], [0, 0, 1, 0], [], []>} : vector<8x8xbf16>, vector<8x8xbf16>, vector<8x8xf32> -> vector<8x8xf32>
    %cst_24 = arith.constant 2.000000e+00 : f32
    %95 = vector.broadcast %cst_24 : f32 to vector<8x8xf32>
    %96 = arith.mulf %94, %95 : vector<8x8xf32>
    %97 = arith.extf %92 : vector<8x8xbf16> to vector<8x8xf32>
    %98 = arith.extf %93 : vector<8x8xbf16> to vector<8x8xf32>
    %99 = arith.mulf %97, %98 : vector<8x8xf32>
    %cst_25 = arith.constant dense<0.000000e+00> : vector<8xf32>
    %100 = vector.multi_reduction <add>, %99, %cst_25 [1] : vector<8x8xf32> to vector<8xf32>
    %101 = vector.shape_cast %100 : vector<8xf32> to vector<8x1xf32>
    %cst_26 = arith.constant 2.000000e+00 : f32
    %102 = vector.broadcast %cst_26 : f32 to vector<8x1xf32>
    %103 = arith.mulf %101, %102 : vector<8x1xf32>
    %cst_27 = arith.constant dense<0xFF800000> : vector<8xf32>
    %104 = vector.multi_reduction <maximumf>, %96, %cst_27 [1] : vector<8x8xf32> to vector<8xf32>
    %105 = vector.shape_cast %104 : vector<8xf32> to vector<8x1xf32>
    %106 = vector.broadcast %105 : vector<8x1xf32> to vector<8x8xf32>
    %107 = arith.subf %96, %106 : vector<8x8xf32>
    %108 = math.exp %107 : vector<8x8xf32>
    %cst_28 = arith.constant dense<0.000000e+00> : vector<8xf32>
    %109 = vector.multi_reduction <add>, %108, %cst_28 [1] : vector<8x8xf32> to vector<8xf32>
    %110 = vector.shape_cast %109 : vector<8xf32> to vector<8x1xf32>
    %111 = math.log %110 : vector<8x1xf32>
    %112 = arith.addf %111, %105 : vector<8x1xf32>
    %cst_29 = arith.constant dense<0xFF800000> : vector<8xf32>
    %113 = vector.multi_reduction <maximumf>, %96, %cst_29 [0] : vector<8x8xf32> to vector<8xf32>
    %114 = vector.shape_cast %113 : vector<8xf32> to vector<1x8xf32>
    %115 = vector.broadcast %114 : vector<1x8xf32> to vector<8x8xf32>
    %116 = arith.subf %96, %115 : vector<8x8xf32>
    %117 = math.exp %116 : vector<8x8xf32>
    %cst_30 = arith.constant dense<0.000000e+00> : vector<8xf32>
    %118 = vector.multi_reduction <add>, %117, %cst_30 [0] : vector<8x8xf32> to vector<8xf32>
    %119 = vector.shape_cast %118 : vector<8xf32> to vector<1x8xf32>
    %120 = math.log %119 : vector<1x8xf32>
    %121 = arith.addf %120, %114 : vector<1x8xf32>
    %122 = arith.subf %112, %103 : vector<8x1xf32>
    %123 = vector.shape_cast %122 : vector<8x1xf32> to vector<1x8x1xf32>
    %cst_31 = arith.constant dense<0.000000e+00> : vector<1xf32>
    %124 = vector.multi_reduction <add>, %123, %cst_31 [1, 2] : vector<1x8x1xf32> to vector<1xf32>
    %125 = vector.shape_cast %124 : vector<1xf32> to vector<1x1x1xf32>
    %126 = vector.extract %125[0, 0, 0] : f32 from vector<1x1x1xf32>
    %cst_32 = arith.constant 8.000000e+00 : f32
    %127 = arith.divf %126, %cst_32 : f32
    %128 = vector.shape_cast %121 : vector<1x8xf32> to vector<1x1x8xf32>
    %cst_33 = arith.constant dense<0.000000e+00> : vector<1xf32>
    %129 = vector.multi_reduction <add>, %128, %cst_33 [1, 2] : vector<1x1x8xf32> to vector<1xf32>
    %130 = vector.shape_cast %129 : vector<1xf32> to vector<1x1x1xf32>
    %131 = vector.extract %130[0, 0, 0] : f32 from vector<1x1x1xf32>
    %cst_34 = arith.constant 8.000000e+00 : f32
    %132 = arith.divf %131, %cst_34 : f32
    %133 = vector.shape_cast %103 : vector<8x1xf32> to vector<1x8x1xf32>
    %cst_35 = arith.constant dense<0.000000e+00> : vector<1xf32>
    %134 = vector.multi_reduction <add>, %133, %cst_35 [1, 2] : vector<1x8x1xf32> to vector<1xf32>
    %135 = vector.shape_cast %134 : vector<1xf32> to vector<1x1x1xf32>
    %136 = vector.extract %135[0, 0, 0] : f32 from vector<1x1x1xf32>
    %cst_36 = arith.constant 8.000000e+00 : f32
    %137 = arith.divf %136, %cst_36 : f32
    %138 = arith.subf %132, %137 : f32
    %139 = arith.addf %127, %138 : f32
    %140 = arith.addf %75, %64 : vector<8x8xf32>
    %141 = vector.extract_strided_slice %0 {offsets = [0, 1056], sizes = [8, 8], strides = [1, 1]} : vector<8x1152xf32> to vector<8x8xf32>
    %cst_37 = arith.constant dense<0xFF800000> : vector<8xf32>
    %142 = vector.multi_reduction <maximumf>, %140, %cst_37 [1] : vector<8x8xf32> to vector<8xf32>
    %143 = vector.shape_cast %142 : vector<8xf32> to vector<8x1xf32>
    %144 = vector.broadcast %143 : vector<8x1xf32> to vector<8x8xf32>
    %145 = arith.subf %140, %144 : vector<8x8xf32>
    %146 = math.exp %145 : vector<8x8xf32>
    %cst_38 = arith.constant dense<0.000000e+00> : vector<8xf32>
    %147 = vector.multi_reduction <add>, %146, %cst_38 [1] : vector<8x8xf32> to vector<8xf32>
    %148 = vector.shape_cast %147 : vector<8xf32> to vector<8x1xf32>
    %149 = tpu.reciprocal %148 {approx = true} : vector<8x1xf32> -> vector<8x1xf32>
    %150 = vector.broadcast %149 : vector<8x1xf32> to vector<8x8xf32>
    %151 = arith.mulf %146, %150 : vector<8x8xf32>
    %152 = arith.subf %151, %141 : vector<8x8xf32>
    %153 = arith.mulf %152, %152 : vector<8x8xf32>
    %154 = vector.shape_cast %153 : vector<8x8xf32> to vector<1x8x8xf32>
    %cst_39 = arith.constant dense<0.000000e+00> : vector<1xf32>
    %155 = vector.multi_reduction <add>, %154, %cst_39 [1, 2] : vector<1x8x8xf32> to vector<1xf32>
    %156 = vector.shape_cast %155 : vector<1xf32> to vector<1x1x1xf32>
    %157 = vector.extract %156[0, 0, 0] : f32 from vector<1x1x1xf32>
    %cst_40 = arith.constant 6.400000e+01 : f32
    %158 = arith.divf %157, %cst_40 : f32
    %159 = arith.addf %139, %158 : f32
    %cst_41 = arith.constant dense<0xFF800000> : vector<8xf32>
    %160 = vector.multi_reduction <maximumf>, %140, %cst_41 [1] : vector<8x8xf32> to vector<8xf32>
    %161 = vector.shape_cast %160 : vector<8xf32> to vector<8x1xf32>
    %162 = tpu.iota {dimensions = array<i32: 1>} : vector<8x8xi32>
    %163 = vector.broadcast %161 : vector<8x1xf32> to vector<8x8xf32>
    %164 = arith.cmpf oeq, %140, %163 : vector<8x8xf32>
    %c9_i32 = arith.constant 9 : i32
    %165 = vector.broadcast %c9_i32 : i32 to vector<8x8xi32>
    %166 = arith.select %164, %162, %165 : vector<8x8xi1>, vector<8x8xi32>
    %cst_42 = arith.constant dense<2147483647> : vector<8xi32>
    %167 = vector.multi_reduction <minsi>, %166, %cst_42 [1] : vector<8x8xi32> to vector<8xi32>
    %168 = vector.shape_cast %167 : vector<8xi32> to vector<8x1xi32>
    %169 = arith.sitofp %168 : vector<8x1xi32> to vector<8x1xf32>
    %170 = tpu.iota {dimensions = array<i32: 1>} : vector<8x128xi32>
    %c0_i32 = arith.constant 0 : i32
    %171 = vector.broadcast %c0_i32 : i32 to vector<8x128xi32>
    %172 = arith.cmpi eq, %170, %171 : vector<8x128xi32>
    %c1_i32 = arith.constant 1 : i32
    %173 = vector.broadcast %c1_i32 : i32 to vector<8x128xi32>
    %174 = arith.cmpi eq, %170, %173 : vector<8x128xi32>
    %cst_43 = arith.constant 0.000000e+00 : f32
    %175 = vector.broadcast %159 : f32 to vector<8x128xf32>
    %176 = vector.broadcast %cst_43 : f32 to vector<8x128xf32>
    %177 = arith.select %174, %175, %176 : vector<8x128xi1>, vector<8x128xf32>
    %178 = vector.shape_cast %169 : vector<8x1xf32> to vector<8x1xf32>
    %179 = vector.broadcast %178 : vector<8x1xf32> to vector<8x128xf32>
    %180 = arith.select %172, %179, %177 : vector<8x128xi1>, vector<8x128xf32>
    %c0_44 = arith.constant 0 : index
    %c0_45 = arith.constant 0 : index
    %181 = vector.load %arg3[%c0_44, %c0_45] : memref<8x128xf32, #tpu.memory_space<vmem>>, vector<8x128xf32>
    tpu.vector_store %arg3[%c0_44, %c0_45], %180 {strides = array<i32>} : memref<8x128xf32, #tpu.memory_space<vmem>>, vector<8x128xf32>,
    return
  }
  func.func @transform_0(%arg0: i32) -> (i32, i32) {
    %c0_i32 = arith.constant 0 : i32
    %c0_i32_0 = arith.constant 0 : i32
    %c0_i32_1 = arith.constant 0 : i32
    return %c0_i32, %c0_i32_0 : i32, i32
  }
  func.func @transform_1(%arg0: i32) -> (i32, i32) {
    %c0_i32 = arith.constant 0 : i32
    %c0_i32_0 = arith.constant 0 : i32
    %c0_i32_1 = arith.constant 0 : i32
    return %c0_i32, %c0_i32_0 : i32, i32
  }
  func.func @transform_2(%arg0: i32) -> (i32, i32) {
    %c0_i32 = arith.constant 0 : i32
    %c0_i32_0 = arith.constant 0 : i32
    %c0_i32_1 = arith.constant 0 : i32
    return %c0_i32, %c0_i32_0 : i32, i32
  }
}

</mosaic_0001>

<llo_original>
// kernel: forward.1
$region0: #{forward.1}
  #allocation0 [shape = 'u32[]', space=smem, size = 0x4, offset = 0x4, fixed_abs, tag = 'smem constant byte address 0x4 - core index']
  #allocation1 [shape = 'u32[72,128]{1,0:T(1,128)}', space=vmem, size = 0x9000, scoped, tag = 'internal scratch']
  %s0 = inlined_call_operand.vmem [shape: f32[8,1152], index: 0, kind: input, shape index: {}]
  %s1 = inlined_call_operand.vmem [shape: bf16[400,128], index: 1, kind: input, shape index: {}]
  %s2 = inlined_call_operand.vmem [shape: f32[8,128], index: 2, kind: output, shape index: {}]
  %s3 = sld [smem:[#allocation0]]
  $region18: #{forward.1} parent=0
    _
  %s5 = ssub.s32 1, %s3
  %s6 = scalar_select 0, %s5, %s3
  // Predicated region
  $region2: #{forward.1} parent=0 // pred_check
    _
  $region3: #{forward.1} parent=0 // pred_check_branch
    %8 = sbr.rel (0) target = $region5
  $region4: #{forward.1} parent=0 // pred_region
    _
  $region5: #{forward.1} parent=0 // pred_fallthru
    _
  // Predicated region
  $region6: #{forward.1} parent=0 // pred_check
    _
  $region7: #{forward.1} parent=0 // pred_check_branch
    %10 = sbr.rel (0) target = $region9
  $region8: #{forward.1} parent=0 // pred_region
    _
  $region9: #{forward.1} parent=0 // pred_fallthru
    _
  %v12 = vld [vmem:[%s0] sm:$0xff]
  %v13 = vld [vmem:[%s0 + $0x8] sm:$0xff]
  %v14 = vld [vmem:[%s0 + $0x10] sm:$0xff]
  %v15 = vld [vmem:[%s0 + $0x18] sm:$0xff]
  %v16 = vld [vmem:[%s0 + $0x20] sm:$0xff]
  %v17 = vld [vmem:[%s0 + $0x28] sm:$0xff]
  %v18 = vld [vmem:[%s0 + $0x30] sm:$0xff]
  %v19 = vld [vmem:[%s0 + $0x38] sm:$0xff]
  %v20 = vld [vmem:[%s0 + $0x40] sm:$0xff]
  %v21 = vpack.c.bf16 %v20, %v20
  %v22 = vld [vmem:[%s1] sm:$0xf]
  %v23 = vld [vmem:[%s1 + $0x4] sm:$0xf]
  %v24 = vld [vmem:[%s1 + $0x8] sm:$0xf]
  %v25 = vld [vmem:[%s1 + $0xc] sm:$0xf]
  %v26 = vld [vmem:[%s1 + $0x10] sm:$0xf]
  %v27 = vld [vmem:[%s1 + $0x14] sm:$0xf]
  %v28 = vld [vmem:[%s1 + $0x18] sm:$0xf]
  %v29 = vld [vmem:[%s1 + $0x1c] sm:$0xf]
  %v30 = vld [vmem:[%s1 + $0x20] sm:$0xf]
  %v31 = vld [vmem:[%s1 + $0x24] sm:$0xf]
  %v32 = vld [vmem:[%s1 + $0x28] sm:$0xf]
  %v33 = vld [vmem:[%s1 + $0x2c] sm:$0xf]
  %v34 = vld [vmem:[%s1 + $0x30] sm:$0xf]
  %v35 = vld [vmem:[%s1 + $0x34] sm:$0xf]
  %v36 = vld [vmem:[%s1 + $0x38] sm:$0xf]
  %v37 = vld [vmem:[%s1 + $0x3c] sm:$0xf]
  %v54 = vunpack.c.l.b16 %v22
  %v55 = vunpack.c.l.b16 %v23
  %v56 = vunpack.c.l.b16 %v24
  %v57 = vunpack.c.l.b16 %v25
  %v58 = vunpack.c.l.b16 %v26
  %v59 = vunpack.c.l.b16 %v27
  %v60 = vunpack.c.l.b16 %v28
  %v61 = vunpack.c.l.b16 %v29
  %v62 = vunpack.c.l.b16 %v30
  %v63 = vunpack.c.l.b16 %v31
  %v64 = vunpack.c.l.b16 %v32
  %v65 = vunpack.c.l.b16 %v33
  %v66 = vunpack.c.l.b16 %v34
  %v67 = vunpack.c.l.b16 %v35
  %v68 = vunpack.c.l.b16 %v36
  %v69 = vunpack.c.l.b16 %v37
  %v70 = vpack.c.b16 %v55, %v54
  %v71 = vpack.c.b16 %v57, %v56
  %v72 = vpack.c.b16 %v59, %v58
  %v73 = vpack.c.b16 %v61, %v60
  %v74 = vpack.c.b16 %v63, %v62
  %v75 = vpack.c.b16 %v65, %v64
  %v76 = vpack.c.b16 %v67, %v66
  %v77 = vpack.c.b16 %v69, %v68
  %86 = vmatpush.bf16.msra.mxu0 %v77
  %87 = vmatpush.bf16.msra.mxu0 %v76
  %88 = vmatpush.bf16.msra.mxu0 %v75
  %89 = vmatpush.bf16.msra.mxu0 %v74
  %90 = vmatpush.bf16.msra.mxu0 %v73
  %91 = vmatpush.bf16.msra.mxu0 %v72
  %92 = vmatpush.bf16.msra.mxu0 %v71
  %93 = vmatpush.bf16.msra.mxu0 %v70
  %94 = vmatmul.bf16.gmra.mxu0 %v21
  %v95 = vpop.f32.mrf.mxu0
  %v96 = vadd.f32 0.0, %v95
  %v97 = vpop.f32.mrf.mxu0
  %98 = vdwg.mxu0
  %v99 = vmax.f32 %v96, 0.0
  %v100 = vld [vmem:[%s1 + $0xc0] sm:$0xf]
  %v101 = vunpack.c.l.bf16 %v100
  %v102 = vadd.f32 %v12, %v13
  %103 = vadd.xlane.f32.xlu0 %v102
  %v104 = vpop.xlane.xlu0 %103
  %v105 = vperm.slane %v101, 0
  %v106 = vmul.f32 %v104, %v105
  %v107 = vperm.slane %v101, 4
  %v108 = vadd.f32 %v107, %v106
  %v109 = vadd.f32 %v14, %v15
  %110 = vadd.xlane.f32.xlu0 %v109
  %v111 = vpop.xlane.xlu0 %110
  %v112 = vperm.slane %v101, 1
  %v113 = vmul.f32 %v111, %v112
  %v114 = vadd.f32 %v108, %v113
  %v115 = vadd.f32 %v16, %v17
  %116 = vadd.xlane.f32.xlu0 %v115
  %v117 = vpop.xlane.xlu0 %116
  %v118 = vperm.slane %v101, 2
  %v119 = vmul.f32 %v117, %v118
  %v120 = vadd.f32 %v114, %v119
  %v121 = vadd.f32 %v18, %v19
  %122 = vadd.xlane.f32.xlu0 %v121
  %v123 = vpop.xlane.xlu0 %122
  %v124 = vperm.slane %v101, 3
  %v125 = vmul.f32 %v123, %v124
  %v126 = vadd.f32 %v120, %v125
  %v127 = vmax.f32 %v126, 0.0
  %v128 = vld [vmem:[%s1 + $0x40] sm:$0xf]
  %v129 = vld [vmem:[%s1 + $0x44] sm:$0xf]
  %v130 = vld [vmem:[%s1 + $0x48] sm:$0xf]
  %v131 = vld [vmem:[%s1 + $0x4c] sm:$0xf]
  %v132 = vld [vmem:[%s1 + $0x50] sm:$0xf]
  %v133 = vld [vmem:[%s1 + $0x54] sm:$0xf]
  %v134 = vld [vmem:[%s1 + $0x58] sm:$0xf]
  %v135 = vld [vmem:[%s1 + $0x5c] sm:$0xf]
  %v136 = vld [vmem:[%s1 + $0x60] sm:$0xf]
  %v137 = vld [vmem:[%s1 + $0x64] sm:$0xf]
  %v138 = vld [vmem:[%s1 + $0x68] sm:$0xf]
  %v139 = vld [vmem:[%s1 + $0x6c] sm:$0xf]
  %v140 = vld [vmem:[%s1 + $0x70] sm:$0xf]
  %v141 = vld [vmem:[%s1 + $0x74] sm:$0xf]
  %v142 = vld [vmem:[%s1 + $0x78] sm:$0xf]
  %v143 = vld [vmem:[%s1 + $0x7c] sm:$0xf]
  %v144 = vpack.c.bf16 %v99, %v99
  %v161 = vunpack.c.l.b16 %v128
  %v162 = vunpack.c.l.b16 %v129
  %v163 = vunpack.c.l.b16 %v130
  %v164 = vunpack.c.l.b16 %v131
  %v165 = vunpack.c.l.b16 %v132
  %v166 = vunpack.c.l.b16 %v133
  %v167 = vunpack.c.l.b16 %v134
  %v168 = vunpack.c.l.b16 %v135
  %v169 = vunpack.c.l.b16 %v136
  %v170 = vunpack.c.l.b16 %v137
  %v171 = vunpack.c.l.b16 %v138
  %v172 = vunpack.c.l.b16 %v139
  %v173 = vunpack.c.l.b16 %v140
  %v174 = vunpack.c.l.b16 %v141
  %v175 = vunpack.c.l.b16 %v142
  %v176 = vunpack.c.l.b16 %v143
  %v177 = vpack.c.b16 %v162, %v161
  %v178 = vpack.c.b16 %v164, %v163
  %v179 = vpack.c.b16 %v166, %v165
  %v180 = vpack.c.b16 %v168, %v167
  %v181 = vpack.c.b16 %v170, %v169
  %v182 = vpack.c.b16 %v172, %v171
  %v183 = vpack.c.b16 %v174, %v173
  %v184 = vpack.c.b16 %v176, %v175
  %193 = vmatpush.bf16.msra.mxu0 %v184
  %194 = vmatpush.bf16.msra.mxu0 %v183
  %195 = vmatpush.bf16.msra.mxu0 %v182
  %196 = vmatpush.bf16.msra.mxu0 %v181
  %197 = vmatpush.bf16.msra.mxu0 %v180
  %198 = vmatpush.bf16.msra.mxu0 %v179
  %199 = vmatpush.bf16.msra.mxu0 %v178
  %200 = vmatpush.bf16.msra.mxu0 %v177
  %201 = vmatmul.bf16.gmra.mxu0 %v144
  %v202 = vpop.f32.mrf.mxu0
  %v203 = vadd.f32 0.0, %v202
  %v204 = vpop.f32.mrf.mxu0
  %205 = vdwg.mxu0
  %v206 = vmax.f32 %v203, 0.0
  %v207 = vadd.f32 %v206, %v127
  %v208 = vld [vmem:[%s1 + $0x80] sm:$0xf]
  %v209 = vld [vmem:[%s1 + $0x84] sm:$0xf]
  %v210 = vld [vmem:[%s1 + $0x88] sm:$0xf]
  %v211 = vld [vmem:[%s1 + $0x8c] sm:$0xf]
  %v212 = vld [vmem:[%s1 + $0x90] sm:$0xf]
  %v213 = vld [vmem:[%s1 + $0x94] sm:$0xf]
  %v214 = vld [vmem:[%s1 + $0x98] sm:$0xf]
  %v215 = vld [vmem:[%s1 + $0x9c] sm:$0xf]
  %v216 = vld [vmem:[%s1 + $0xa0] sm:$0xf]
  %v217 = vld [vmem:[%s1 + $0xa4] sm:$0xf]
  %v218 = vld [vmem:[%s1 + $0xa8] sm:$0xf]
  %v219 = vld [vmem:[%s1 + $0xac] sm:$0xf]
  %v220 = vld [vmem:[%s1 + $0xb0] sm:$0xf]
  %v221 = vld [vmem:[%s1 + $0xb4] sm:$0xf]
  %v222 = vld [vmem:[%s1 + $0xb8] sm:$0xf]
  %v223 = vld [vmem:[%s1 + $0xbc] sm:$0xf]
  %v224 = vpack.c.bf16 %v207, %v207
  %v241 = vunpack.c.l.b16 %v208
  %v242 = vunpack.c.l.b16 %v209
  %v243 = vunpack.c.l.b16 %v210
  %v244 = vunpack.c.l.b16 %v211
  %v245 = vunpack.c.l.b16 %v212
  %v246 = vunpack.c.l.b16 %v213
  %v247 = vunpack.c.l.b16 %v214
  %v248 = vunpack.c.l.b16 %v215
  %v249 = vunpack.c.l.b16 %v216
  %v250 = vunpack.c.l.b16 %v217
  %v251 = vunpack.c.l.b16 %v218
  %v252 = vunpack.c.l.b16 %v219
  %v253 = vunpack.c.l.b16 %v220
  %v254 = vunpack.c.l.b16 %v221
  %v255 = vunpack.c.l.b16 %v222
  %v256 = vunpack.c.l.b16 %v223
  %v257 = vpack.c.b16 %v242, %v241
  %v258 = vpack.c.b16 %v244, %v243
  %v259 = vpack.c.b16 %v246, %v245
  %v260 = vpack.c.b16 %v248, %v247
  %v261 = vpack.c.b16 %v250, %v249
  %v262 = vpack.c.b16 %v252, %v251
  %v263 = vpack.c.b16 %v254, %v253
  %v264 = vpack.c.b16 %v256, %v255
  %273 = vmatpush.bf16.msra.mxu0 %v264
  %274 = vmatpush.bf16.msra.mxu0 %v263
  %275 = vmatpush.bf16.msra.mxu0 %v262
  %276 = vmatpush.bf16.msra.mxu0 %v261
  %277 = vmatpush.bf16.msra.mxu0 %v260
  %278 = vmatpush.bf16.msra.mxu0 %v259
  %279 = vmatpush.bf16.msra.mxu0 %v258
  %280 = vmatpush.bf16.msra.mxu0 %v257
  %281 = vmatmul.bf16.gmra.mxu0 %v224
  %v282 = vpop.f32.mrf.mxu0
  %v283 = vadd.f32 0.0, %v282
  %v284 = vpop.f32.mrf.mxu0
  %285 = vdwg.mxu0
  %vm286 = vcmask 64512
  %v287 = vsel %vm286, %v283, -inf
  %288 = vmax.xlane.f32.xlu0 %v287
  %v289 = vpop.xlane.xlu0 %288
  %v290 = vsub.f32 %v283, %v289
  %v291 = vmul.f32 %v290, 1.442695
  %v292 = vpow.pop %v291
  %v293 = vsel %vm286, %v292, 0.0
  %294 = vadd.xlane.f32.xlu0 %v293
  %v295 = vpop.xlane.xlu0 %294
  %v296 = vrcp.pop %v295
  %v297 = vmul.f32 %v292, %v296
  %vm298 = vcmask 130112
  %v299 = vsel %vm298, %v283, -inf
  %300 = vmax.xlane.f32.xlu0 %v299
  %v301 = vpop.xlane.xlu0 %300
  %v302 = vsub.f32 %v283, %v301
  %v303 = vmul.f32 %v302, 1.442695
  %v304 = vpow.pop %v303
  %306 = vrot.lane.b32.xlu0 %v304, 120
  %v307 = vpop.permute.xlu0 %306
  %v309 = vsel %vm286, %v307, 0.0
  %310 = vadd.xlane.f32.xlu0 %v309
  %v311 = vpop.xlane.xlu0 %310
  %v312 = vrcp.pop %v311
  %v313 = vmul.f32 %v304, %v312
  %v314 = vmul.f32 %v297, %v297
  %v315 = vsel %vm286, %v314, 0.0
  %316 = vadd.xlane.f32.xlu0 %v315
  %v317 = vpop.xlane.xlu0 %316
  %v318 = vmax.f32 %v317, 1e-24
  %v319 = vrsqrt.pop %v318
  %v320 = vmul.f32 %v319, %v318
  %v321 = vmul.f32 %v320, %v319
  %v322 = vmul.f32 0.5, %v321
  %v323 = vsub.f32 1.5, %v322
  %v324 = vmul.f32 %v319, %v323
  %vm325 = vweird.f32 %v318
  %vm326 = vweird.f32 %v319
  %vm327 = vmor %vm325, %vm326
  %v328 = vsel %vm327, %v319, %v324
  %v329 = vmul.f32 %v297, %v328
  %v330 = vmul.f32 %v313, %v313
  %332 = vrot.lane.b32.xlu0 %v330, 120
  %v333 = vpop.permute.xlu0 %332
  %v335 = vsel %vm286, %v333, 0.0
  %336 = vadd.xlane.f32.xlu0 %v335
  %v337 = vpop.xlane.xlu0 %336
  %v338 = vmax.f32 %v337, 1e-24
  %v339 = vrsqrt.pop %v338
  %v340 = vmul.f32 %v339, %v338
  %v341 = vmul.f32 %v340, %v339
  %v342 = vmul.f32 0.5, %v341
  %v343 = vsub.f32 1.5, %v342
  %v344 = vmul.f32 %v339, %v343
  %vm345 = vweird.f32 %v338
  %vm346 = vweird.f32 %v339
  %vm347 = vmor %vm345, %vm346
  %v348 = vsel %vm347, %v339, %v344
  %v349 = vmul.f32 %v313, %v348
  %v350 = vpack.c.bf16 %v329, %v329
  %v351 = vpack.c.bf16 %v349, %v349
  %v353 = vunpack.c.l.b16 %v351
  %v354 = vpack.c.b16 %v353, %v353
  %355 = vrot.lane.b32.xlu0 %v354, 120
  %v356 = vpop.permute.xlu0 %355
  %v358 = vsel %vm286, %v350, 0
  %v361 = vsel %vm286, %v356, 0
  %363 = vmatpush.bf16.xpose.msra.mxu0 0
  %364 = vmatpush.bf16.xpose.msra.mxu0 0
  %365 = vmatpush.bf16.xpose.msra.mxu0 0
  %366 = vmatpush.bf16.xpose.msra.mxu0 0
  %367 = vmatpush.bf16.xpose.msra.mxu0 0
  %368 = vmatpush.bf16.xpose.msra.mxu0 0
  %369 = vmatpush.bf16.xpose.msra.mxu0 0
  %370 = vmatpush.bf16.xpose.msra.mxu0 %v361
  %371 = vmatmul.bf16.gmra.mxu0 %v358
  %v372 = vpop.f32.mrf.mxu0
  %v373 = vadd.f32 0.0, %v372
  %v374 = vpop.f32.mrf.mxu0
  %375 = vdwg.mxu0
  %v376 = vmul.f32 %v373, 2.0
  %v377 = vunpack.c.l.bf16 %v350
  %v378 = vunpack.c.l.bf16 %v351
  %380 = vrot.lane.b32.xlu0 %v378, 120
  %v381 = vpop.permute.xlu0 %380
  %v383 = vmul.f32 %v377, %v381
  %v384 = vsel %vm286, %v383, 0.0
  %385 = vadd.xlane.f32.xlu0 %v384
  %v386 = vpop.xlane.xlu0 %385
  %v387 = vmul.f32 %v386, 2.0
  %v388 = vsel %vm286, %v376, -inf
  %389 = vmax.xlane.f32.xlu0 %v388
  %v390 = vpop.xlane.xlu0 %389
  %v391 = vsub.f32 %v376, %v390
  %v392 = vmul.f32 %v391, 1.442695
  %v393 = vpow.pop %v392
  %v394 = vsel %vm286, %v393, 0.0
  %395 = vadd.xlane.f32.xlu0 %v394
  %v396 = vpop.xlane.xlu0 %395
  %v397 = vlog2.pop %v396
  %v398 = vmul.f32 %v397, 0.6931472
  %v399 = vadd.f32 %v398, %v390
  %v400 = vrot.slane %v388, 4
  %v401 = vmax.f32 %v388, %v400
  %v402 = vrot.slane %v401, 2
  %v403 = vmax.f32 %v401, %v402
  %v404 = vrot.slane %v403, 1
  %v405 = vmax.f32 %v403, %v404
  %v406 = vsub.f32 %v376, %v405
  %v407 = vmul.f32 %v406, 1.442695
  %v408 = vpow.pop %v407
  %v409 = vsel %vm286, %v408, 0.0
  %v410 = vrot.slane %v409, 4
  %v411 = vadd.f32 %v409, %v410
  %v412 = vrot.slane %v411, 2
  %v413 = vadd.f32 %v411, %v412
  %v414 = vrot.slane %v413, 1
  %v415 = vadd.f32 %v413, %v414
  %v416 = vlog2.pop %v415
  %v417 = vmul.f32 %v416, 0.6931472
  %v418 = vadd.f32 %v417, %v405
  %v419 = vsub.f32 %v399, %v387
  %vm420 = vcmask 7168
  %v421 = vsel %vm420, %v419, 0.0
  %422 = vadd.xlane.f32.xlu0 %v421
  %v423 = vpop.xlane.xlu0 %422
  %v424 = vrot.slane %v423, 4
  %v425 = vadd.f32 %v423, %v424
  %v426 = vrot.slane %v425, 2
  %v427 = vadd.f32 %v425, %v426
  %v428 = vrot.slane %v427, 1
  %v429 = vadd.f32 %v427, %v428
  %s430 = vtos %v429
  %v431 = vrcp.pop 8.0
  %v432 = vmul.f32 8.0, %v431
  %v433 = vsub.f32 1.0, %v432
  %v434 = vmul.f32 %v431, %v433
  %v435 = vadd.f32 %v431, %v434
  %vm436 = vweird.f32 %v431
  %v437 = vsel %vm436, %v431, %v435
  %s438 = vtos %v437
  %s439 = smul.f32 %s430, %s438
  %vm440 = vcmask 57344
  %v441 = vsel %vm440, %v418, 0.0
  %442 = vadd.xlane.f32.xlu0 %v441
  %v443 = vpop.xlane.xlu0 %442
  %v444 = vrot.slane %v443, 4
  %v445 = vadd.f32 %v443, %v444
  %v446 = vrot.slane %v445, 2
  %v447 = vadd.f32 %v445, %v446
  %v448 = vrot.slane %v447, 1
  %v449 = vadd.f32 %v447, %v448
  %s450 = vtos %v449
  %v451 = vrcp.pop 8.0
  %v452 = vmul.f32 8.0, %v451
  %v453 = vsub.f32 1.0, %v452
  %v454 = vmul.f32 %v451, %v453
  %v455 = vadd.f32 %v451, %v454
  %vm456 = vweird.f32 %v451
  %v457 = vsel %vm456, %v451, %v455
  %s458 = vtos %v457
  %s459 = smul.f32 %s450, %s458
  %v460 = vsel %vm420, %v387, 0.0
  %461 = vadd.xlane.f32.xlu0 %v460
  %v462 = vpop.xlane.xlu0 %461
  %v463 = vrot.slane %v462, 4
  %v464 = vadd.f32 %v462, %v463
  %v465 = vrot.slane %v464, 2
  %v466 = vadd.f32 %v464, %v465
  %v467 = vrot.slane %v466, 1
  %v468 = vadd.f32 %v466, %v467
  %s469 = vtos %v468
  %v470 = vrcp.pop 8.0
  %v471 = vmul.f32 8.0, %v470
  %v472 = vsub.f32 1.0, %v471
  %v473 = vmul.f32 %v470, %v472
  %v474 = vadd.f32 %v470, %v473
  %vm475 = vweird.f32 %v470
  %v476 = vsel %vm475, %v470, %v474
  %s477 = vtos %v476
  %s478 = smul.f32 %s469, %s477
  %s479 = ssub.f32 %s459, %s478
  %s480 = sadd.f32 %s439, %s479
  %482 = vrot.lane.b32.xlu0 %v297, 8
  %v483 = vpop.permute.xlu0 %482
  %v485 = vadd.f32 %v313, %v483
  %v486 = vsel %vm298, %v485, -inf
  %487 = vmax.xlane.f32.xlu0 %v486
  %v488 = vpop.xlane.xlu0 %487
  %v489 = vsub.f32 %v485, %v488
  %v490 = vmul.f32 %v489, 1.442695
  %v491 = vpow.pop %v490
  %493 = vrot.lane.b32.xlu0 %v491, 120
  %v494 = vpop.permute.xlu0 %493
  %v496 = vsel %vm286, %v494, 0.0
  %497 = vadd.xlane.f32.xlu0 %v496
  %v498 = vpop.xlane.xlu0 %497
  %v499 = vrcp.pop %v498
  %v500 = vmul.f32 %v491, %v499
  %502 = vrot.lane.b32.xlu0 %v20, 104
  %v503 = vpop.permute.xlu0 %502
  %v505 = vsub.f32 %v500, %v503
  %v506 = vmul.f32 %v505, %v505
  %508 = vrot.lane.b32.xlu0 %v506, 120
  %v509 = vpop.permute.xlu0 %508
  %v511 = vsel %vm286, %v509, 0.0
  %512 = vadd.xlane.f32.xlu0 %v511
  %v513 = vpop.xlane.xlu0 %512
  %v514 = vrot.slane %v513, 4
  %v515 = vadd.f32 %v513, %v514
  %v516 = vrot.slane %v515, 2
  %v517 = vadd.f32 %v515, %v516
  %v518 = vrot.slane %v517, 1
  %v519 = vadd.f32 %v517, %v518
  %s520 = vtos %v519
  %v521 = vrcp.pop 64.0
  %v522 = vmul.f32 64.0, %v521
  %v523 = vsub.f32 1.0, %v522
  %v524 = vmul.f32 %v521, %v523
  %v525 = vadd.f32 %v521, %v524
  %vm526 = vweird.f32 %v521
  %v527 = vsel %vm526, %v521, %v525
  %s528 = vtos %v527
  %s529 = smul.f32 %s520, %s528
  %s530 = sadd.f32 %s480, %s529
  %v531 = vlaneseq
  %v532 = vand.u32 %v531, 127
  %vm533 = vcmp.eq.f32.partialorder %v485, %v488
  %534 = vrot.lane.b32.xlu0 %v532, 8
  %v535 = vpop.permute.xlu0 %534
  %v536 = vsel %vm533, %v535, 9
  %v537 = vsel %vm298, %v536, 2147483647
  %v538 = vand.u32 %v537, 65535
  %v539 = vshra.s32 %v537, 16
  %v540 = vcvt.s32.f32 %v538
  %v541 = vcvt.s32.f32 %v539
  %542 = vmin.xlane.f32.xlu0 %v541
  %v543 = vpop.xlane.xlu0 %542
  %vm544 = vcmp.eq.f32.partialorder %v541, %v543
  %v545 = vsel %vm544, %v540, inf
  %546 = vmin.xlane.f32.xlu0 %v545
  %v547 = vpop.xlane.xlu0 %546
  %v548 = vcvt.f32.s32 %v547
  %v549 = vcvt.f32.s32 %v543
  %v550 = vshll.u32 %v549, 16
  %v551 = vadd.s32 %v550, %v548
  %v552 = vcvt.s32.f32 %v551
  %vm553 = vcmp.eq.s32.totalorder %v532, 0
  %vm554 = vcmp.eq.s32.totalorder %v532, 1
  %v555 = vstv %s530
  %v556 = vsel %vm554, %v555, 0.0
  %v557 = vsel %vm553, %v552, %v556
  %558 = vst [vmem:[%s2] sm:$0xff] %v557
  // Predicated region
  $region10: #{forward.1} parent=0 // pred_check
    _
  $region11: #{forward.1} parent=0 // pred_check_branch
    %560 = sbr.rel (0) target = $region13
  $region12: #{forward.1} parent=0 // pred_region
    _
  $region13: #{forward.1} parent=0 // pred_fallthru
    _
  // Predicated region
  $region14: #{forward.1} parent=0 // pred_check
    _
  $region15: #{forward.1} parent=0 // pred_check_branch
    %562 = sbr.rel (0) target = $region17
  $region16: #{forward.1} parent=0 // pred_region
    _
  $region17: #{forward.1} parent=0 // pred_fallthru
    _

</llo_original>
